<compile_context>
chip_gen: v7x
topology: tpu7x:2x2x1
jax: 0.10.0
libtpu: 0.0.40
codegen_flags: <defaults>
</compile_context>

<pallas_src>
import jax
import jax.numpy as jnp
from jax.experimental import pallas as pl
from jax.experimental.pallas import tpu as pltpu


def _dma_copy_kernel(z_hbm, out_hbm, sem):
    # forward() -> self.z : materialize the parameter with one HBM->HBM DMA.
    cp = pltpu.make_async_copy(z_hbm, out_hbm, sem)
    cp.start()
    cp.wait()


def _materialize_copy(z):
    """One-shot HBM->HBM DMA copy of `z` (no grid, no VMEM staging)."""
    n, d = z.shape
    itemsize = jnp.dtype(z.dtype).itemsize
    return pl.pallas_call(
        _dma_copy_kernel,
        out_shape=jax.ShapeDtypeStruct((n, d), z.dtype),
        in_specs=[pl.BlockSpec(memory_space=pl.ANY)],
        out_specs=pl.BlockSpec(memory_space=pl.ANY),
        scratch_shapes=[pltpu.SemaphoreType.DMA(())],
        cost_estimate=pl.CostEstimate(
            flops=0,
            transcendentals=0,
            bytes_accessed=2 * n * d * itemsize,
        ),
    )(z)


def graph_forward(z, *, materialize=False):
    """Pallas implementation of GRAPH.forward().

    forward() returns the parameter `z` unchanged. The zero-cost (and
    default) implementation is therefore simply `return z` -- no kernel,
    no HBM traffic. Set materialize=True to force an explicit copy into a
    fresh HBM buffer via a single async DMA kernel.
    """
    if not materialize:
        return z
    return _materialize_copy(z)


if __name__ == "__main__":
    key = jax.random.PRNGKey(0)

    # Small synthetic stand-in for the checkpointed parameter `z`.
    num_nodes, hidden = 16, 128
    z = jax.random.normal(key, (num_nodes, hidden), dtype=jnp.float32)

    # 1) Semantically-exact forward: zero work, returns z itself.
    out = graph_forward(z)
    out = jax.block_until_ready(out)
    assert out.shape == z.shape and out.dtype == z.dtype
    assert bool(jnp.all(out == z))

    # 2) Explicitly materialized copy via the single-DMA Pallas kernel.
    out2 = graph_forward(z, materialize=True)
    out2 = jax.block_until_ready(out2)
    assert out2.shape == z.shape and out2.dtype == z.dtype
    assert bool(jnp.all(out2 == z))

    # 3) Robustness: non-(8,128)-aligned node count / width and bf16 dtype
    #    (a raw HBM->HBM DMA has no lane-masking or tiling constraints).
    z_bf16 = jax.random.normal(key, (50, 96), dtype=jnp.float32).astype(jnp.bfloat16)
    out3 = graph_forward(z_bf16, materialize=True)
    out3 = jax.block_until_ready(out3)
    assert out3.shape == z_bf16.shape and out3.dtype == z_bf16.dtype
    assert bool(jnp.all(out3 == z_bf16))

    print("KERNEL_OK")
</pallas_src>

<mosaic_0001>
module attributes {stable_mosaic.version = 11 : i64} {
  func.func @_dma_copy_kernel(%arg0: memref<16x128xf32, #tpu.memory_space<any>>, %arg1: memref<16x128xf32, #tpu.memory_space<any>>, %arg2: memref<!tpu.dma_semaphore, #tpu.memory_space<semaphore_mem>>) attributes {dimension_semantics = [], scalar_prefetch = 0 : i64, scratch_operands = 1 : i64, tpu.core_type = #tpu.core_type<tc>} {
    tpu.enqueue_dma source(%arg0 : memref<16x128xf32, #tpu.memory_space<any>>) target(%arg1 : memref<16x128xf32, #tpu.memory_space<any>>) target_semaphore(%arg2 : memref<!tpu.dma_semaphore, #tpu.memory_space<semaphore_mem>>)
    tpu.wait_dma2 semaphore(%arg2 : memref<!tpu.dma_semaphore, #tpu.memory_space<semaphore_mem>>) src(%arg0 : memref<16x128xf32, #tpu.memory_space<any>>) dst(%arg1 : memref<16x128xf32, #tpu.memory_space<any>>)
    return
  }
}

</mosaic_0001>

<llo_original>
// kernel: tpu_custom_call.1
$region0: #{tpu_custom_call.1}
  #allocation0 [shape = 'u32[]', space=smem, size = 0x4, offset = 0x4, fixed_abs, tag = 'smem constant byte address 0x4 - core index']
  #allocation1 [shape = 'u32[144,128]{1,0:T(1,128)}', space=vmem, size = 0x12000, scoped, tag = 'internal scratch']
  #allocation2 [shape = 's32[1]{0}', space=sflag, size = 0x4, scoped, tag = 'scratch operand']
  #allocation3 [shape = 's32[]', space=sflag, size = 0x4, offset = 0, fixed_abs, tag = 'sflag constant byte address 0x0 - dummy sync flag']
  #allocation4 [shape = 'u32[0]{0}', space=smem, size = 0, offset = 0, fixed_abs, tag = 'smem constant byte address 0x0 - null']
  %s0 = inlined_call_operand.hbm [shape: f32[16,128], index: 0, kind: input, shape index: {}]
  %s1 = inlined_call_operand.hbm [shape: f32[16,128], index: 1, kind: output, shape index: {}]
  %s2 = sld [smem:[#allocation0]]
  $region2: #{tpu_custom_call.1} parent=0
    _
  %s4 = ssub.s32 1, %s2
  %s5 = scalar_select 0, %s4, %s2
  %s7 = sshll.u32 1, 14
  %s8 = sxor.u32 4294967295, %s7
  %s11 = sshll.u32 3, 24
  %s12 = sxor.u32 4294967295, %s11
  %s13 = sand.u32 0, %s12
  %s15 = sor.u32 %s13, 0
  %18 = dma.general %s0, 256, %s1, [#allocation2], [#allocation3], [#allocation4], %s15, 0
  %s19 = smul.u32 16, 1
  %s20 = sshll.u32 %s19, 4
  %21 = dma.done [#allocation2], %s20
  %22 = vsyncmov [#allocation2]
  %s23 = vpop.sfrf %22
  %p24 = scmp.eq.s32.totalorder %s23, 0
  %p25 = pneg %p24
  %27 = shalt.err (%p25)

</llo_original>
